<compile_context>
chip_gen: v7x
topology: tpu7x:2x2x1
jax: 0.10.0
libtpu: 0.0.40
codegen_flags: <defaults>
</compile_context>

<pallas_src>
import math

import jax
import jax.numpy as jnp
from jax.experimental import pallas as pl
from jax.experimental.pallas import tpu as pltpu

_NUM_STREAMS = 4        # 3 inputs + 1 output
_PIPELINE_BUFFERS = 2   # BlockSpec auto-pipelining double-buffers each stream


def _modality_visual_2_kernel(total_ref, pad_v_ref, pad_a_ref, o_ref):
    o_ref[...] = 0.5 * (total_ref[...] - pad_v_ref[...] + pad_a_ref[...])


def _vmem_budget_bytes():
    """Scoped-VMEM budget for this kernel: ~60% of physical VMEM."""
    try:
        cap = pltpu.get_tpu_info().vmem_capacity_bytes
    except Exception:
        cap = 64 << 20  # conservative default (v7x per-TC capacity)
    return max(16 << 20, int(cap * 0.6))


def _choose_tiles(rows, cols, elem_bytes, budget):
    """Largest (tile_rows, tile_cols) whose pipeline footprint fits `budget`."""
    tile_bytes = budget // (_NUM_STREAMS * _PIPELINE_BUFFERS)

    # Lane (last) dim: keep the full width if it fits with at least 8 rows,
    # otherwise block it at a large multiple of 128 (lane-dense stores).
    if 8 * cols * elem_bytes <= tile_bytes:
        tile_cols = cols
    else:
        tile_cols = (tile_bytes // (8 * elem_bytes)) // 128 * 128
        tile_cols = max(128, min(2048, tile_cols))

    max_rows = max(8, tile_bytes // (tile_cols * elem_bytes))
    if max_rows >= rows:
        tile_rows = rows                      # full dim: always legal
    else:
        tile_rows = max(8, (max_rows // 8) * 8)  # multiple of 8
    return tile_rows, tile_cols


def modality_visual_2(total_out, pad_visual_out, pad_audio_out):
    """Pallas TPU implementation of Modality_Visual_2.forward (any shape/rank)."""
    assert total_out.shape == pad_visual_out.shape == pad_audio_out.shape
    assert total_out.dtype == pad_visual_out.dtype == pad_audio_out.dtype
    orig_shape = total_out.shape
    dtype = total_out.dtype

    # Flatten to a 2-D [rows, cols] view, keeping the last (lane) dim intact.
    if total_out.ndim == 0:
        rows, cols = 1, 1
    elif total_out.ndim == 1:
        rows, cols = 1, orig_shape[0]
    else:
        cols = orig_shape[-1]
        rows = math.prod(orig_shape[:-1])

    def as2d(a):
        return a.reshape(rows, cols)

    elem_bytes = jnp.dtype(dtype).itemsize
    budget = _vmem_budget_bytes()
    tile_rows, tile_cols = _choose_tiles(rows, cols, elem_bytes, budget)

    grid = (pl.cdiv(rows, tile_rows), pl.cdiv(cols, tile_cols))
    spec = pl.BlockSpec((tile_rows, tile_cols), lambda i, j: (i, j))

    out2 = pl.pallas_call(
        _modality_visual_2_kernel,
        out_shape=jax.ShapeDtypeStruct((rows, cols), dtype),
        grid_spec=pl.GridSpec(
            grid=grid,
            in_specs=[spec, spec, spec],
            out_specs=spec,
        ),
        compiler_params=pltpu.CompilerParams(
            dimension_semantics=("parallel", "parallel"),
            vmem_limit_bytes=budget,
        ),
    )(as2d(total_out), as2d(pad_visual_out), as2d(pad_audio_out))
    return out2.reshape(orig_shape)


def _reference(total_out, pad_visual_out, pad_audio_out):
    return 0.5 * (total_out - pad_visual_out + pad_audio_out)


if __name__ == "__main__":
    key = jax.random.PRNGKey(0)
    # Small logits-like shape consistent with the module: [batch, num_classes].
    batch, num_classes = 8, 32
    k0, k1, k2 = jax.random.split(key, 3)
    total_out = jax.random.normal(k0, (batch, num_classes), dtype=jnp.float32)
    pad_visual_out = jax.random.normal(k1, (batch, num_classes), dtype=jnp.float32)
    pad_audio_out = jax.random.normal(k2, (batch, num_classes), dtype=jnp.float32)

    out = modality_visual_2(total_out, pad_visual_out, pad_audio_out)
    jax.block_until_ready(out)

    ref = _reference(total_out, pad_visual_out, pad_audio_out)
    assert out.shape == ref.shape and out.dtype == ref.dtype
    assert jnp.allclose(out, ref, atol=1e-6, rtol=1e-6)

    print("KERNEL_OK")
</pallas_src>

<mosaic_0001>
module attributes {stable_mosaic.version = 11 : i64} {
  func.func @_modality_visual_2_kernel(%arg0: i32, %arg1: i32, %arg2: memref<8x32xf32, #tpu.memory_space<vmem>>, %arg3: memref<8x32xf32, #tpu.memory_space<vmem>>, %arg4: memref<8x32xf32, #tpu.memory_space<vmem>>, %arg5: memref<8x32xf32, #tpu.memory_space<vmem>>) attributes {dimension_semantics = [#tpu.dimension_semantics<parallel>, #tpu.dimension_semantics<parallel>], iteration_bounds = array<i64: 1, 1>, scalar_prefetch = 0 : i64, scratch_operands = 0 : i64, tpu.core_type = #tpu.core_type<tc>, window_params = [{transform_indices = @transform_0, window_bounds = array<i64: 8, 32>}, {transform_indices = @transform_1, window_bounds = array<i64: 8, 32>}, {transform_indices = @transform_2, window_bounds = array<i64: 8, 32>}, {transform_indices = @transform_3, window_bounds = array<i64: 8, 32>}]} {
    %c0 = arith.constant 0 : index
    %c0_0 = arith.constant 0 : index
    %0 = vector.load %arg2[%c0, %c0_0] : memref<8x32xf32, #tpu.memory_space<vmem>>, vector<8x32xf32>
    %c0_1 = arith.constant 0 : index
    %c0_2 = arith.constant 0 : index
    %1 = vector.load %arg3[%c0_1, %c0_2] : memref<8x32xf32, #tpu.memory_space<vmem>>, vector<8x32xf32>
    %2 = arith.subf %0, %1 : vector<8x32xf32>
    %c0_3 = arith.constant 0 : index
    %c0_4 = arith.constant 0 : index
    %3 = vector.load %arg4[%c0_3, %c0_4] : memref<8x32xf32, #tpu.memory_space<vmem>>, vector<8x32xf32>
    %4 = arith.addf %2, %3 : vector<8x32xf32>
    %cst = arith.constant 5.000000e-01 : f32
    %5 = vector.broadcast %cst : f32 to vector<8x32xf32>
    %6 = arith.mulf %5, %4 : vector<8x32xf32>
    %c0_5 = arith.constant 0 : index
    %c0_6 = arith.constant 0 : index
    %7 = vector.load %arg5[%c0_5, %c0_6] : memref<8x32xf32, #tpu.memory_space<vmem>>, vector<8x32xf32>
    tpu.vector_store %arg5[%c0_5, %c0_6], %6 {strides = array<i32>} : memref<8x32xf32, #tpu.memory_space<vmem>>, vector<8x32xf32>,
    return
  }
  func.func @transform_0(%arg0: i32, %arg1: i32) -> (i32, i32) {
    %c0_i32 = arith.constant 0 : i32
    return %arg0, %arg1 : i32, i32
  }
  func.func @transform_1(%arg0: i32, %arg1: i32) -> (i32, i32) {
    %c0_i32 = arith.constant 0 : i32
    return %arg0, %arg1 : i32, i32
  }
  func.func @transform_2(%arg0: i32, %arg1: i32) -> (i32, i32) {
    %c0_i32 = arith.constant 0 : i32
    return %arg0, %arg1 : i32, i32
  }
  func.func @transform_3(%arg0: i32, %arg1: i32) -> (i32, i32) {
    %c0_i32 = arith.constant 0 : i32
    return %arg0, %arg1 : i32, i32
  }
}

</mosaic_0001>

<llo_original>
// kernel: tpu_custom_call.1
$region0: #{tpu_custom_call.1}
  #allocation0 [shape = 'u32[]', space=smem, size = 0x4, offset = 0x4, fixed_abs, tag = 'smem constant byte address 0x4 - core index']
  #allocation1 [shape = 'u32[144,128]{1,0:T(1,128)}', space=vmem, size = 0x12000, scoped, tag = 'internal scratch']
  %s0 = inlined_call_operand.hbm [shape: f32[8,32], index: 0, kind: input, shape index: {}]
  %s1 = inlined_call_operand.hbm [shape: f32[8,32], index: 1, kind: input, shape index: {}]
  %s2 = inlined_call_operand.hbm [shape: f32[8,32], index: 2, kind: input, shape index: {}]
  %s3 = inlined_call_operand.hbm [shape: f32[8,32], index: 3, kind: output, shape index: {}]
  %s4 = sld [smem:[#allocation0]]
  $region34: #{tpu_custom_call.1} parent=0
    _
  %s6 = ssub.s32 1, %s4
  %s7 = scalar_select 0, %s6, %s4
  $region1: #{tpu_custom_call.1} parent=0
    #allocation2 [shape = 'u8[4096]{0}', space=vmem, size = 0x1000, scoped, tag = 'input window, operand 0, single buffered']
    #allocation3 [shape = 's32[1]{0}', space=sflag, size = 0x4, scoped, tag = 'scoped memory for tpu_custom_call.1']
    #allocation4 [shape = 's32[1]{0}', space=sflag, size = 0x4, scoped, tag = 'scoped memory for tpu_custom_call.1']
    #allocation5 [shape = 'u8[4096]{0}', space=vmem, size = 0x1000, scoped, tag = 'input window, operand 1, single buffered']
    #allocation6 [shape = 's32[1]{0}', space=sflag, size = 0x4, scoped, tag = 'scoped memory for tpu_custom_call.1']
    #allocation7 [shape = 'u8[4096]{0}', space=vmem, size = 0x1000, scoped, tag = 'input window, operand 2, single buffered']
    #allocation8 [shape = 'u8[4096]{0}', space=vmem, size = 0x1000, scoped, tag = 'output window, operand 0, single buffered']
    %8 = vsyncpa [#allocation3], 0
    %9 = vsyncpa [#allocation6], 0
    %10 = vsyncpa [#allocation4], 0
    // Predicated region
    $region2: #{tpu_custom_call.1} parent=1 // pred_check
      _
    $region3: #{tpu_custom_call.1} parent=1 // pred_check_branch
      %12 = sbr.rel (0) target = $region5
    $region4: #{tpu_custom_call.1} parent=1 // pred_region
      %s14 = ssub.s32 128, 128
      %15 = vsyncadd [#allocation3], %s14
      %s17 = sshll.u32 [#allocation2], 4
      %s18 = int_to_ptr.vmem [resolvable:$true] %s17
      %20 = dma.hbm_to_vmem [thread:$0]  %s0, 128, %s18, [#allocation3]
    $region5: #{tpu_custom_call.1} parent=1 // pred_fallthru
      _
    // Predicated region
    $region6: #{tpu_custom_call.1} parent=1 // pred_check
      _
    $region7: #{tpu_custom_call.1} parent=1 // pred_check_branch
      %22 = sbr.rel (0) target = $region9
    $region8: #{tpu_custom_call.1} parent=1 // pred_region
      %s24 = ssub.s32 128, 128
      %25 = vsyncadd [#allocation6], %s24
      %s27 = sshll.u32 [#allocation5], 4
      %s28 = int_to_ptr.vmem [resolvable:$true] %s27
      %30 = dma.hbm_to_vmem [thread:$0]  %s1, 128, %s28, [#allocation6]
    $region9: #{tpu_custom_call.1} parent=1 // pred_fallthru
      _
    // Predicated region
    $region10: #{tpu_custom_call.1} parent=1 // pred_check
      _
    $region11: #{tpu_custom_call.1} parent=1 // pred_check_branch
      %32 = sbr.rel (0) target = $region13
    $region12: #{tpu_custom_call.1} parent=1 // pred_region
      %s34 = ssub.s32 128, 128
      %35 = vsyncadd [#allocation6], %s34
      %s37 = sshll.u32 [#allocation7], 4
      %s38 = int_to_ptr.vmem [resolvable:$true] %s37
      %40 = dma.hbm_to_vmem [thread:$0]  %s2, 128, %s38, [#allocation6]
    $region13: #{tpu_custom_call.1} parent=1 // pred_fallthru
      _
    // Predicated region
    $region14: #{tpu_custom_call.1} parent=1 // pred_check
      _
    $region15: #{tpu_custom_call.1} parent=1 // pred_check_branch
      %42 = sbr.rel (0) target = $region17
    $region16: #{tpu_custom_call.1} parent=1 // pred_region
      %43 = dma.done [#allocation3], 128
    $region17: #{tpu_custom_call.1} parent=1 // pred_fallthru
      _
    // Predicated region
    $region18: #{tpu_custom_call.1} parent=1 // pred_check
      _
    $region19: #{tpu_custom_call.1} parent=1 // pred_check_branch
      %45 = sbr.rel (0) target = $region21
    $region20: #{tpu_custom_call.1} parent=1 // pred_region
      %46 = dma.done [#allocation6], 128
    $region21: #{tpu_custom_call.1} parent=1 // pred_fallthru
      _
    // Predicated region
    $region22: #{tpu_custom_call.1} parent=1 // pred_check
      _
    $region23: #{tpu_custom_call.1} parent=1 // pred_check_branch
      %48 = sbr.rel (0) target = $region25
    $region24: #{tpu_custom_call.1} parent=1 // pred_region
      %49 = dma.done [#allocation6], 128
    $region25: #{tpu_custom_call.1} parent=1 // pred_fallthru
      _
    %v50 = vld [vmem:[#allocation2] sm:$0xff]
    %v51 = vld [vmem:[#allocation5] sm:$0xff]
    %v52 = vsub.f32 %v50, %v51
    %v53 = vld [vmem:[#allocation7] sm:$0xff]
    %v54 = vadd.f32 %v52, %v53
    %v55 = vmul.f32 %v54, 0.5
    %vm56 = vcmask 261120
    %57 = vst.msk [vmem:[#allocation8] sm:$0xff] %vm56, %v55
    // Predicated region
    $region26: #{tpu_custom_call.1} parent=1 // pred_check
      _
    $region27: #{tpu_custom_call.1} parent=1 // pred_check_branch
      %59 = sbr.rel (0) target = $region29
    $region28: #{tpu_custom_call.1} parent=1 // pred_region
      %s61 = ssub.s32 128, 128
      %62 = vsyncadd [#allocation4], %s61
      %s64 = sshll.u32 [#allocation8], 4
      %s65 = int_to_ptr.vmem [resolvable:$true] %s64
      %67 = dma.vmem_to_hbm [thread:$0]  %s65, 128, %s3, [#allocation4]
    $region29: #{tpu_custom_call.1} parent=1 // pred_fallthru
      _
    // Predicated region
    $region30: #{tpu_custom_call.1} parent=1 // pred_check
      _
    $region31: #{tpu_custom_call.1} parent=1 // pred_check_branch
      %69 = sbr.rel (0) target = $region33
    $region32: #{tpu_custom_call.1} parent=1 // pred_region
      %70 = dma.done [#allocation4], 128
    $region33: #{tpu_custom_call.1} parent=1 // pred_fallthru
      _
    %71 = vsyncpa [#allocation3], 1
    %72 = vsyncpa [#allocation6], 1
    %73 = vsyncpa [#allocation4], 1

</llo_original>
